<compile_context>
chip_gen: v7x
topology: tpu7x:2x2x1
jax: 0.10.0
libtpu: 0.0.40
codegen_flags: <defaults>
</compile_context>

<pallas_src>
import functools

import jax
import jax.numpy as jnp
from jax.experimental import pallas as pl
from jax.experimental.pallas import tpu as pltpu


# ----------------------------------------------------------------------------
# Small helpers
# ----------------------------------------------------------------------------
def _round_up(n, m):
    return ((n + m - 1) // m) * m


def _cdiv(a, b):
    return -(-a // b)


def _pad_to(a, shape):
    pads = [(0, s - d) for d, s in zip(a.shape, shape)]
    if all(p == (0, 0) for p in pads):
        return a
    return jnp.pad(a, pads)


def _device_flags():
    """(is_v5, is_v7) best-effort detection; defaults are safe for any TPU."""
    try:
        kind = jax.devices()[0].device_kind.lower()
    except Exception:  # pragma: no cover
        kind = ""
    return ("v5" in kind), ("v7" in kind)


def default_bf16_epilogue():
    is_v5, _ = _device_flags()
    return not is_v5  # v5e has no bf16 VPU path; keep f32 epilogue there


# ----------------------------------------------------------------------------
# Kernel
# ----------------------------------------------------------------------------
def actor_kernel(x_ref, w1_ref, b1_ref, w2_ref, b2_ref, w3_ref, b3_ref,
                 scale_ref, bias_ref, out_ref, *, bf16_epilogue):
    """One (TB, obs_dim) batch tile of the fused 3-layer MLP.

    x_ref:  (TB, obs_dim) f32          (cast to bf16 in-kernel)
    w*_ref: bf16 weights, lane-dense   (w3/b3/scale/bias zero-padded to N_pad)
    b1/b2/b3/scale/bias: (1, *) f32
    out_ref: (TB, N_pad) bf16          (padded action dim; sliced outside)
    """
    bf = jnp.bfloat16
    x = x_ref[...].astype(bf)                                   # in-kernel cast

    # fc1 + ReLU  (MXU bf16, f32 accumulate)
    h1 = jnp.dot(x, w1_ref[...], preferred_element_type=jnp.float32)
    if bf16_epilogue:
        h1 = jnp.maximum(h1.astype(bf) + b1_ref[...].astype(bf), 0).astype(bf)
    else:
        h1 = jnp.maximum(h1 + b1_ref[...], 0.0).astype(bf)

    # fc2 + ReLU
    h2 = jnp.dot(h1, w2_ref[...], preferred_element_type=jnp.float32)
    if bf16_epilogue:
        h2 = jnp.maximum(h2.astype(bf) + b2_ref[...].astype(bf), 0).astype(bf)
    else:
        h2 = jnp.maximum(h2 + b2_ref[...], 0.0).astype(bf)

    # fc_mu + tanh + action rescale (kept in f32; padded lanes carry garbage
    # of tanh(b3)*scale+bias which is sliced off outside). Store bf16.
    mu = jnp.dot(h2, w3_ref[...], preferred_element_type=jnp.float32)
    mu = jnp.tanh(mu + b3_ref[...])
    out_ref[...] = (mu * scale_ref[...] + bias_ref[...]).astype(out_ref.dtype)


# ----------------------------------------------------------------------------
# Parameter preprocessing (one-time)
# ----------------------------------------------------------------------------
def prepare_params(params):
    """Lane-dense padding of the output path + bf16 weight casts.

    Note: only the fc_mu / output axis is padded (to a multiple of 128).
    The obs/K axis is deliberately left unpadded (see review).
    """
    obs_dim, hidden = params["w1"].shape
    act_dim = params["w3"].shape[1]
    assert hidden % 128 == 0, "hidden dim must be a multiple of 128 (module uses 256)"
    N = _round_up(act_dim, 128)

    arrays = (
        params["w1"].astype(jnp.bfloat16),                      # (obs_dim, H)
        params["b1"].astype(jnp.float32),                       # (1, H)
        params["w2"].astype(jnp.bfloat16),                      # (H, H)
        params["b2"].astype(jnp.float32),                       # (1, H)
        _pad_to(params["w3"], (hidden, N)).astype(jnp.bfloat16),  # (H, N_pad)
        _pad_to(params["b3"], (1, N)).astype(jnp.float32),
        _pad_to(params["action_scale"], (1, N)).astype(jnp.float32),
        _pad_to(params["action_bias"], (1, N)).astype(jnp.float32),
    )
    return dict(arrays=arrays, obs_dim=obs_dim, act_dim=act_dim,
                hidden=hidden, n_pad=N)


# ----------------------------------------------------------------------------
# pallas_call wrapper
# ----------------------------------------------------------------------------
@functools.partial(jax.jit, static_argnames=("block_batch", "bf16_epilogue"))
def _actor_forward_padded(x_pad, arrays, *, block_batch, bf16_epilogue):
    """x_pad: (B_pad, obs_dim) f32, B_pad a multiple of block_batch."""
    w1, b1, w2, b2, w3, b3, scale, bias = arrays
    B_pad, K = x_pad.shape
    H = w1.shape[1]
    N = w3.shape[1]
    TB = block_batch
    grid = (B_pad // TB,)

    # Weights/biases: same block every grid step -> stay resident in VMEM.
    resident = lambda shape: pl.BlockSpec(shape, lambda i: (0, 0))

    flops = 2 * B_pad * (K * H + H * H + H * N)
    bytes_accessed = (
        x_pad.size * 4                                           # f32 x
        + (w1.size + w2.size + w3.size) * 2                     # bf16 weights
        + (b1.size + b2.size + b3.size + scale.size + bias.size) * 4
        + B_pad * N * 2)                                         # bf16 out

    kernel = functools.partial(actor_kernel, bf16_epilogue=bf16_epilogue)

    return pl.pallas_call(
        kernel,
        out_shape=jax.ShapeDtypeStruct((B_pad, N), jnp.bfloat16),
        grid=grid,
        in_specs=[
            pl.BlockSpec((TB, K), lambda i: (i, 0)),   # x tile (K == obs_dim)
            resident((K, H)),                          # w1
            resident((1, H)),                          # b1
            resident((H, H)),                          # w2
            resident((1, H)),                          # b2
            resident((H, N)),                          # w3
            resident((1, N)),                          # b3
            resident((1, N)),                          # action_scale
            resident((1, N)),                          # action_bias
        ],
        out_specs=pl.BlockSpec((TB, N), lambda i: (i, 0)),
        compiler_params=pltpu.CompilerParams(
            dimension_semantics=("parallel",)),        # v7x: split batch tiles
        cost_estimate=pl.CostEstimate(
            flops=flops,
            transcendentals=B_pad * N,                 # tanh
            bytes_accessed=bytes_accessed),
    )(x_pad, w1, b1, w2, b2, w3, b3, scale, bias)


def actor_forward(x, prepped, *, block_batch=512, bf16_epilogue=None):
    """x: (B, obs_dim) f32.  prepped: output of prepare_params.  Returns (B, act_dim) f32."""
    B, obs_dim = x.shape
    assert obs_dim == prepped["obs_dim"]
    act_dim = prepped["act_dim"]

    is_v5, is_v7 = _device_flags()
    if bf16_epilogue is None:
        bf16_epilogue = not is_v5
    min_tiles = 2 if is_v7 else 1      # make sure v7x's 2nd TensorCore gets tiles

    # Batch tiling: TB multiple of 8, capped at the (8-padded) batch so a
    # batch of e.g. TB+1 rows never doubles the padded batch.
    B8 = _round_up(B, 8)
    TB = min(block_batch, max(8, _round_up(_cdiv(B8, min_tiles), 8)))
    B_pad = _cdiv(B8, TB) * TB

    x_pad = _pad_to(x, (B_pad, obs_dim))               # only batch rows padded
    out = _actor_forward_padded(x_pad, prepped["arrays"],
                                block_batch=TB, bf16_epilogue=bf16_epilogue)
    return out[:B, :act_dim].astype(jnp.float32)


# ----------------------------------------------------------------------------
# Parameters + pure-JAX reference
# ----------------------------------------------------------------------------
def make_params(key, obs_dim, act_dim, hidden=256):
    """Deterministic synthetic parameters (shapes match the PyTorch module).

    Weights are (in_features, out_features) — the transpose of nn.Linear —
    so the kernel computes plain `x @ W + b`.
    """
    ks = jax.random.split(key, 6)

    def linear(kw, kb, fan_in, fan_out):
        bound = 1.0 / jnp.sqrt(fan_in)
        w = jax.random.uniform(kw, (fan_in, fan_out), jnp.float32, -bound, bound)
        b = jax.random.uniform(kb, (1, fan_out), jnp.float32, -bound, bound)
        return w, b

    w1, b1 = linear(ks[0], ks[1], obs_dim, hidden)
    w2, b2 = linear(ks[2], ks[3], hidden, hidden)
    w3, b3 = linear(ks[4], ks[5], hidden, act_dim)

    # synthetic action bounds: low=-1, high=2 -> scale=1.5, bias=0.5
    high = jnp.full((1, act_dim), 2.0, jnp.float32)
    low = jnp.full((1, act_dim), -1.0, jnp.float32)
    return dict(
        w1=w1, b1=b1, w2=w2, b2=b2, w3=w3, b3=b3,
        action_scale=(high - low) / 2.0,
        action_bias=(high + low) / 2.0,
    )


def actor_ref(x, p, *, bf16_epilogue):
    """Pure-JAX reference mirroring the kernel's bf16-MXU numeric path."""
    bf = jnp.bfloat16
    h1 = jnp.dot(x.astype(bf), p["w1"].astype(bf),
                 preferred_element_type=jnp.float32)
    if bf16_epilogue:
        h1 = jnp.maximum(h1.astype(bf) + p["b1"].astype(bf), 0).astype(bf)
    else:
        h1 = jnp.maximum(h1 + p["b1"], 0.0).astype(bf)
    h2 = jnp.dot(h1, p["w2"].astype(bf), preferred_element_type=jnp.float32)
    if bf16_epilogue:
        h2 = jnp.maximum(h2.astype(bf) + p["b2"].astype(bf), 0).astype(bf)
    else:
        h2 = jnp.maximum(h2 + p["b2"], 0.0).astype(bf)
    mu = jnp.tanh(jnp.dot(h2, p["w3"].astype(bf),
                          preferred_element_type=jnp.float32) + p["b3"])
    return (mu * p["action_scale"] + p["action_bias"]).astype(jnp.float32)


# ----------------------------------------------------------------------------
if __name__ == "__main__":
    key = jax.random.PRNGKey(0)
    k_x, k_p = jax.random.split(key)

    B, OBS_DIM, ACT_DIM = 8, 16, 4
    x = jax.random.normal(k_x, (B, OBS_DIM), jnp.float32)
    params = make_params(k_p, OBS_DIM, ACT_DIM)
    prepped = prepare_params(params)

    bf16_epi = default_bf16_epilogue()
    out = actor_forward(x, prepped, bf16_epilogue=bf16_epi)
    out = jax.block_until_ready(out)

    ref = actor_ref(x, params, bf16_epilogue=bf16_epi)
    assert out.shape == (B, ACT_DIM), out.shape
    # bf16 output store + HW tanh vs XLA tanh -> allow bf16-level tolerance.
    assert jnp.allclose(out, ref, atol=2e-2, rtol=2e-2), "mismatch vs reference"

    print("KERNEL_OK")
</pallas_src>

<mosaic_0001>
module attributes {stable_mosaic.version = 11 : i64} {
  func.func @actor_kernel(%arg0: i32, %arg1: memref<8x16xf32, #tpu.memory_space<vmem>>, %arg2: memref<16x256xbf16, #tpu.memory_space<vmem>>, %arg3: memref<1x256xf32, #tpu.memory_space<vmem>>, %arg4: memref<256x256xbf16, #tpu.memory_space<vmem>>, %arg5: memref<1x256xf32, #tpu.memory_space<vmem>>, %arg6: memref<256x128xbf16, #tpu.memory_space<vmem>>, %arg7: memref<1x128xf32, #tpu.memory_space<vmem>>, %arg8: memref<1x128xf32, #tpu.memory_space<vmem>>, %arg9: memref<1x128xf32, #tpu.memory_space<vmem>>, %arg10: memref<8x128xbf16, #tpu.memory_space<vmem>>) attributes {dimension_semantics = [#tpu.dimension_semantics<parallel>], iteration_bounds = array<i64: 1>, scalar_prefetch = 0 : i64, scratch_operands = 0 : i64, tpu.core_type = #tpu.core_type<tc>, window_params = [{transform_indices = @transform_0, window_bounds = array<i64: 8, 16>}, {pipeline_mode = #tpu.pipeline_mode<synchronous>, transform_indices = @transform_1, window_bounds = array<i64: 16, 256>}, {pipeline_mode = #tpu.pipeline_mode<synchronous>, transform_indices = @transform_2, window_bounds = array<i64: 1, 256>}, {pipeline_mode = #tpu.pipeline_mode<synchronous>, transform_indices = @transform_3, window_bounds = array<i64: 256, 256>}, {pipeline_mode = #tpu.pipeline_mode<synchronous>, transform_indices = @transform_4, window_bounds = array<i64: 1, 256>}, {pipeline_mode = #tpu.pipeline_mode<synchronous>, transform_indices = @transform_5, window_bounds = array<i64: 256, 128>}, {pipeline_mode = #tpu.pipeline_mode<synchronous>, transform_indices = @transform_6, window_bounds = array<i64: 1, 128>}, {pipeline_mode = #tpu.pipeline_mode<synchronous>, transform_indices = @transform_7, window_bounds = array<i64: 1, 128>}, {pipeline_mode = #tpu.pipeline_mode<synchronous>, transform_indices = @transform_8, window_bounds = array<i64: 1, 128>}, {transform_indices = @transform_9, window_bounds = array<i64: 8, 128>}]} {
    %c0 = arith.constant 0 : index
    %c0_0 = arith.constant 0 : index
    %0 = vector.load %arg1[%c0, %c0_0] : memref<8x16xf32, #tpu.memory_space<vmem>>, vector<8x16xf32>
    %1 = arith.truncf %0 : vector<8x16xf32> to vector<8x16xbf16>
    %c0_1 = arith.constant 0 : index
    %c0_2 = arith.constant 0 : index
    %2 = vector.load %arg2[%c0_1, %c0_2] : memref<16x256xbf16, #tpu.memory_space<vmem>>, vector<16x256xbf16>
    %cst = arith.constant dense<0.000000e+00> : vector<8x256xf32>
    %3 = tpu.matmul %1, %2, %cst {dimension_numbers = #tpu.dot_dimension_numbers<[1], [0], [0], [1], [0, 0, 1, 1], [], []>} : vector<8x16xbf16>, vector<16x256xbf16>, vector<8x256xf32> -> vector<8x256xf32>
    %4 = arith.truncf %3 : vector<8x256xf32> to vector<8x256xbf16>
    %c0_3 = arith.constant 0 : index
    %c0_4 = arith.constant 0 : index
    %5 = vector.load %arg3[%c0_3, %c0_4] : memref<1x256xf32, #tpu.memory_space<vmem>>, vector<1x256xf32>
    %6 = arith.truncf %5 : vector<1x256xf32> to vector<1x256xbf16>
    %7 = vector.broadcast %6 : vector<1x256xbf16> to vector<8x256xbf16>
    %8 = arith.addf %4, %7 : vector<8x256xbf16>
    %cst_5 = arith.constant 0.000000e+00 : bf16
    %9 = vector.broadcast %cst_5 : bf16 to vector<8x256xbf16>
    %10 = arith.maximumf %8, %9 : vector<8x256xbf16>
    %c0_6 = arith.constant 0 : index
    %c0_7 = arith.constant 0 : index
    %11 = vector.load %arg4[%c0_6, %c0_7] : memref<256x256xbf16, #tpu.memory_space<vmem>>, vector<256x256xbf16>
    %cst_8 = arith.constant dense<0.000000e+00> : vector<8x256xf32>
    %12 = tpu.matmul %10, %11, %cst_8 {dimension_numbers = #tpu.dot_dimension_numbers<[1], [0], [0], [1], [0, 0, 1, 1], [], []>} : vector<8x256xbf16>, vector<256x256xbf16>, vector<8x256xf32> -> vector<8x256xf32>
    %13 = arith.truncf %12 : vector<8x256xf32> to vector<8x256xbf16>
    %c0_9 = arith.constant 0 : index
    %c0_10 = arith.constant 0 : index
    %14 = vector.load %arg5[%c0_9, %c0_10] : memref<1x256xf32, #tpu.memory_space<vmem>>, vector<1x256xf32>
    %15 = arith.truncf %14 : vector<1x256xf32> to vector<1x256xbf16>
    %16 = vector.broadcast %15 : vector<1x256xbf16> to vector<8x256xbf16>
    %17 = arith.addf %13, %16 : vector<8x256xbf16>
    %cst_11 = arith.constant 0.000000e+00 : bf16
    %18 = vector.broadcast %cst_11 : bf16 to vector<8x256xbf16>
    %19 = arith.maximumf %17, %18 : vector<8x256xbf16>
    %c0_12 = arith.constant 0 : index
    %c0_13 = arith.constant 0 : index
    %20 = vector.load %arg6[%c0_12, %c0_13] : memref<256x128xbf16, #tpu.memory_space<vmem>>, vector<256x128xbf16>
    %cst_14 = arith.constant dense<0.000000e+00> : vector<8x128xf32>
    %21 = tpu.matmul %19, %20, %cst_14 {dimension_numbers = #tpu.dot_dimension_numbers<[1], [0], [0], [1], [0, 0, 1, 1], [], []>} : vector<8x256xbf16>, vector<256x128xbf16>, vector<8x128xf32> -> vector<8x128xf32>
    %c0_15 = arith.constant 0 : index
    %c0_16 = arith.constant 0 : index
    %22 = vector.load %arg7[%c0_15, %c0_16] : memref<1x128xf32, #tpu.memory_space<vmem>>, vector<1x128xf32>
    %23 = vector.broadcast %22 : vector<1x128xf32> to vector<8x128xf32>
    %24 = arith.addf %21, %23 : vector<8x128xf32>
    %25 = math.tanh %24 : vector<8x128xf32>
    %c0_17 = arith.constant 0 : index
    %c0_18 = arith.constant 0 : index
    %26 = vector.load %arg8[%c0_17, %c0_18] : memref<1x128xf32, #tpu.memory_space<vmem>>, vector<1x128xf32>
    %27 = vector.broadcast %26 : vector<1x128xf32> to vector<8x128xf32>
    %28 = arith.mulf %25, %27 : vector<8x128xf32>
    %c0_19 = arith.constant 0 : index
    %c0_20 = arith.constant 0 : index
    %29 = vector.load %arg9[%c0_19, %c0_20] : memref<1x128xf32, #tpu.memory_space<vmem>>, vector<1x128xf32>
    %30 = vector.broadcast %29 : vector<1x128xf32> to vector<8x128xf32>
    %31 = arith.addf %28, %30 : vector<8x128xf32>
    %32 = arith.truncf %31 : vector<8x128xf32> to vector<8x128xbf16>
    %c0_21 = arith.constant 0 : index
    %c0_22 = arith.constant 0 : index
    %33 = vector.load %arg10[%c0_21, %c0_22] : memref<8x128xbf16, #tpu.memory_space<vmem>>, vector<8x128xbf16>
    tpu.vector_store %arg10[%c0_21, %c0_22], %32 {strides = array<i32>} : memref<8x128xbf16, #tpu.memory_space<vmem>>, vector<8x128xbf16>,
    return
  }
  func.func @transform_0(%arg0: i32) -> (i32, i32) {
    %c0_i32 = arith.constant 0 : i32
    %c0_i32_0 = arith.constant 0 : i32
    return %arg0, %c0_i32 : i32, i32
  }
  func.func @transform_1(%arg0: i32) -> (i32, i32) {
    %c0_i32 = arith.constant 0 : i32
    %c0_i32_0 = arith.constant 0 : i32
    %c0_i32_1 = arith.constant 0 : i32
    return %c0_i32, %c0_i32_0 : i32, i32
  }
  func.func @transform_2(%arg0: i32) -> (i32, i32) {
    %c0_i32 = arith.constant 0 : i32
    %c0_i32_0 = arith.constant 0 : i32
    %c0_i32_1 = arith.constant 0 : i32
    return %c0_i32, %c0_i32_0 : i32, i32
  }
  func.func @transform_3(%arg0: i32) -> (i32, i32) {
    %c0_i32 = arith.constant 0 : i32
    %c0_i32_0 = arith.constant 0 : i32
    %c0_i32_1 = arith.constant 0 : i32
    return %c0_i32, %c0_i32_0 : i32, i32
  }
  func.func @transform_4(%arg0: i32) -> (i32, i32) {
    %c0_i32 = arith.constant 0 : i32
    %c0_i32_0 = arith.constant 0 : i32
    %c0_i32_1 = arith.constant 0 : i32
    return %c0_i32, %c0_i32_0 : i32, i32
  }
  func.func @transform_5(%arg0: i32) -> (i32, i32) {
    %c0_i32 = arith.constant 0 : i32
    %c0_i32_0 = arith.constant 0 : i32
    %c0_i32_1 = arith.constant 0 : i32
    return %c0_i32, %c0_i32_0 : i32, i32
  }
  func.func @transform_6(%arg0: i32) -> (i32, i32) {
    %c0_i32 = arith.constant 0 : i32
    %c0_i32_0 = arith.constant 0 : i32
    %c0_i32_1 = arith.constant 0 : i32
    return %c0_i32, %c0_i32_0 : i32, i32
  }
  func.func @transform_7(%arg0: i32) -> (i32, i32) {
    %c0_i32 = arith.constant 0 : i32
    %c0_i32_0 = arith.constant 0 : i32
    %c0_i32_1 = arith.constant 0 : i32
    return %c0_i32, %c0_i32_0 : i32, i32
  }
  func.func @transform_8(%arg0: i32) -> (i32, i32) {
    %c0_i32 = arith.constant 0 : i32
    %c0_i32_0 = arith.constant 0 : i32
    %c0_i32_1 = arith.constant 0 : i32
    return %c0_i32, %c0_i32_0 : i32, i32
  }
  func.func @transform_9(%arg0: i32) -> (i32, i32) {
    %c0_i32 = arith.constant 0 : i32
    %c0_i32_0 = arith.constant 0 : i32
    return %arg0, %c0_i32 : i32, i32
  }
}

</mosaic_0001>

<llo_original>
// kernel: _actor_forward_padded.1
$region0: #{_actor_forward_padded.1}
  #allocation0 [shape = 'u32[]', space=smem, size = 0x4, offset = 0x4, fixed_abs, tag = 'smem constant byte address 0x4 - core index']
  #allocation1 [shape = 'u32[144,128]{1,0:T(1,128)}', space=vmem, size = 0x12000, scoped, tag = 'internal scratch']
  %s0 = inlined_call_operand.hbm [shape: f32[8,16], index: 0, kind: input, shape index: {}]
  %s1 = inlined_call_operand.hbm [shape: bf16[16,256], index: 1, kind: input, shape index: {}]
  %s2 = inlined_call_operand.vmem [shape: f32[1,256], index: 2, kind: input, shape index: {}]
  %s3 = inlined_call_operand.hbm [shape: bf16[256,256], index: 3, kind: input, shape index: {}]
  %s4 = inlined_call_operand.vmem [shape: f32[1,256], index: 4, kind: input, shape index: {}]
  %s5 = inlined_call_operand.hbm [shape: bf16[256,128], index: 5, kind: input, shape index: {}]
  %s6 = inlined_call_operand.vmem [shape: f32[1,128], index: 6, kind: input, shape index: {}]
  %s7 = inlined_call_operand.vmem [shape: f32[1,128], index: 7, kind: input, shape index: {}]
  %s8 = inlined_call_operand.vmem [shape: f32[1,128], index: 8, kind: input, shape index: {}]
  %s9 = inlined_call_operand.hbm [shape: bf16[8,128], index: 9, kind: output, shape index: {}]
  %s10 = sld [smem:[#allocation0]]
  $region62: #{_actor_forward_padded.1} parent=0
    _
  %s12 = ssub.s32 1, %s10
  %s13 = scalar_select 0, %s12, %s10
  $region1: #{_actor_forward_padded.1} parent=0
    #allocation2 [shape = 'u8[4096]{0}', space=vmem, size = 0x1000, scoped, tag = 'input window, operand 0, single buffered']
    #allocation3 [shape = 's32[1]{0}', space=sflag, size = 0x4, scoped, tag = 'scoped memory for _actor_forward_padded.1']
    #allocation4 [shape = 's32[1]{0}', space=sflag, size = 0x4, scoped, tag = 'scoped memory for _actor_forward_padded.1']
    #allocation5 [shape = 'u8[8192]{0}', space=vmem, size = 0x2000, scoped, tag = 'input window, operand 1, single buffered']
    #allocation6 [shape = 's32[1]{0}', space=sflag, size = 0x4, scoped, tag = 'scoped memory for _actor_forward_padded.1']
    #allocation7 [shape = 'u8[131072]{0}', space=vmem, size = 0x20000, scoped, tag = 'input window, operand 3, single buffered']
    #allocation8 [shape = 'u8[65536]{0}', space=vmem, size = 0x10000, scoped, tag = 'input window, operand 5, single buffered']
    #allocation9 [shape = 's32[1]{0}', space=sflag, size = 0x4, scoped, tag = 'scoped memory for _actor_forward_padded.1']
    #allocation10 [shape = 'u8[2048]{0}', space=vmem, size = 0x800, scoped, tag = 'output window, operand 0, single buffered']
    %14 = vsyncpa [#allocation3], 0
    %15 = vsyncpa [#allocation6], 0
    %16 = vsyncpa [#allocation9], 0
    %17 = vsyncpa [#allocation4], 0
    // Predicated region
    $region2: #{_actor_forward_padded.1} parent=1 // pred_check
      _
    $region3: #{_actor_forward_padded.1} parent=1 // pred_check_branch
      %19 = sbr.rel (0) target = $region5
    $region4: #{_actor_forward_padded.1} parent=1 // pred_region
      %s21 = ssub.s32 128, 128
      %22 = vsyncadd [#allocation3], %s21
      %s24 = sshll.u32 [#allocation2], 4
      %s25 = int_to_ptr.vmem [resolvable:$true] %s24
      %27 = dma.hbm_to_vmem [thread:$0]  %s0, 128, %s25, [#allocation3]
    $region5: #{_actor_forward_padded.1} parent=1 // pred_fallthru
      _
    // Predicated region
    $region6: #{_actor_forward_padded.1} parent=1 // pred_check
      _
    $region7: #{_actor_forward_padded.1} parent=1 // pred_check_branch
      %29 = sbr.rel (0) target = $region9
    $region8: #{_actor_forward_padded.1} parent=1 // pred_region
      %s31 = ssub.s32 256, 256
      %32 = vsyncadd [#allocation6], %s31
      %s33 = sshll.u32 [#allocation5], 4
      %s34 = int_to_ptr.vmem [resolvable:$true] %s33
      %39 = dma.hbm_to_vmem [thread:$0]  %s1, 256, %s34, [#allocation6], 128, 128, 8
    $region9: #{_actor_forward_padded.1} parent=1 // pred_fallthru
      _
    // Predicated region
    $region10: #{_actor_forward_padded.1} parent=1 // pred_check
      _
    $region11: #{_actor_forward_padded.1} parent=1 // pred_check_branch
      %41 = sbr.rel (0) target = $region13
    $region12: #{_actor_forward_padded.1} parent=1 // pred_region
      _
    $region13: #{_actor_forward_padded.1} parent=1 // pred_fallthru
      _
    // Predicated region
    $region14: #{_actor_forward_padded.1} parent=1 // pred_check
      _
    $region15: #{_actor_forward_padded.1} parent=1 // pred_check_branch
      %43 = sbr.rel (0) target = $region17
    $region16: #{_actor_forward_padded.1} parent=1 // pred_region
      %s45 = ssub.s32 4096, 4096
      %46 = vsyncadd [#allocation6], %s45
      %s47 = sshll.u32 [#allocation7], 4
      %s48 = int_to_ptr.vmem [resolvable:$true] %s47
      %53 = dma.hbm_to_vmem [thread:$0]  %s3, 4096, %s48, [#allocation6], 128, 128, 8
    $region17: #{_actor_forward_padded.1} parent=1 // pred_fallthru
      _
    // Predicated region
    $region18: #{_actor_forward_padded.1} parent=1 // pred_check
      _
    $region19: #{_actor_forward_padded.1} parent=1 // pred_check_branch
      %55 = sbr.rel (0) target = $region21
    $region20: #{_actor_forward_padded.1} parent=1 // pred_region
      _
    $region21: #{_actor_forward_padded.1} parent=1 // pred_fallthru
      _
    // Predicated region
    $region22: #{_actor_forward_padded.1} parent=1 // pred_check
      _
    $region23: #{_actor_forward_padded.1} parent=1 // pred_check_branch
      %57 = sbr.rel (0) target = $region25
    $region24: #{_actor_forward_padded.1} parent=1 // pred_region
      %s59 = ssub.s32 2048, 2048
      %60 = vsyncadd [#allocation9], %s59
      %s61 = sshll.u32 [#allocation8], 4
      %s62 = int_to_ptr.vmem [resolvable:$true] %s61
      %67 = dma.hbm_to_vmem [thread:$0]  %s5, 2048, %s62, [#allocation9], 64, 64, 4
    $region25: #{_actor_forward_padded.1} parent=1 // pred_fallthru
      _
    // Predicated region
    $region26: #{_actor_forward_padded.1} parent=1 // pred_check
      _
    $region27: #{_actor_forward_padded.1} parent=1 // pred_check_branch
      %69 = sbr.rel (0) target = $region29
    $region28: #{_actor_forward_padded.1} parent=1 // pred_region
      _
    $region29: #{_actor_forward_padded.1} parent=1 // pred_fallthru
      _
    // Predicated region
    $region30: #{_actor_forward_padded.1} parent=1 // pred_check
      _
    $region31: #{_actor_forward_padded.1} parent=1 // pred_check_branch
      %71 = sbr.rel (0) target = $region33
    $region32: #{_actor_forward_padded.1} parent=1 // pred_region
      _
    $region33: #{_actor_forward_padded.1} parent=1 // pred_fallthru
      _
    // Predicated region
    $region34: #{_actor_forward_padded.1} parent=1 // pred_check
      _
    $region35: #{_actor_forward_padded.1} parent=1 // pred_check_branch
      %73 = sbr.rel (0) target = $region37
    $region36: #{_actor_forward_padded.1} parent=1 // pred_region
      _
    $region37: #{_actor_forward_padded.1} parent=1 // pred_fallthru
      _
    // Predicated region
    $region38: #{_actor_forward_padded.1} parent=1 // pred_check
      _
    $region39: #{_actor_forward_padded.1} parent=1 // pred_check_branch
      %75 = sbr.rel (0) target = $region41
    $region40: #{_actor_forward_padded.1} parent=1 // pred_region
      %76 = dma.done [#allocation3], 128
    $region41: #{_actor_forward_padded.1} parent=1 // pred_fallthru
      _
    // Predicated region
    $region42: #{_actor_forward_padded.1} parent=1 // pred_check
      _
    $region43: #{_actor_forward_padded.1} parent=1 // pred_check_branch
      %78 = sbr.rel (0) target = $region45
    $region44: #{_actor_forward_padded.1} parent=1 // pred_region
      %79 = dma.done [#allocation6], 256
    $region45: #{_actor_forward_padded.1} parent=1 // pred_fallthru
      _
    // Predicated region
    $region46: #{_actor_forward_padded.1} parent=1 // pred_check
      _
    $region47: #{_actor_forward_padded.1} parent=1 // pred_check_branch
      %81 = sbr.rel (0) target = $region49
    $region48: #{_actor_forward_padded.1} parent=1 // pred_region
      %82 = dma.done [#allocation6], 4096
    $region49: #{_actor_forward_padded.1} parent=1 // pred_fallthru
      _
    // Predicated region
    $region50: #{_actor_forward_padded.1} parent=1 // pred_check
      _
    $region51: #{_actor_forward_padded.1} parent=1 // pred_check_branch
      %84 = sbr.rel (0) target = $region53
    $region52: #{_actor_forward_padded.1} parent=1 // pred_region
      %85 = dma.done [#allocation9], 2048
    $region53: #{_actor_forward_padded.1} parent=1 // pred_fallthru
      _
    %v87 = vld [vmem:[#allocation2] sm:$0xff]
    %v88 = vpack.c.bf16 %v87, %v87
    %v89 = vld [vmem:[#allocation5] sm:$0xff]
    %v90 = vld [vmem:[#allocation5 + $0x8] sm:$0xff]
    %v93 = vunpack.c.l.b16 %v89
    %v94 = vunpack.c.h.b16 %v89
    %v95 = vunpack.c.l.b16 %v90
    %v96 = vunpack.c.h.b16 %v90
    %v97 = vpack.c.b16 %v95, %v93
    %v98 = vpack.c.b16 %v96, %v94
    %vm101 = vcmask 130048
    %v103 = vsel %vm101, %v88, 0
    %105 = vmatprep.subr.bf16.mxu0 %v98
    %106 = vmatpush1.bf16.msra.mxu0 %v97
    %107 = vmatprep.subr.bf16.mxu0 0
    %108 = vmatpush1.bf16.msra.mxu0 0
    %109 = vmatprep.subr.bf16.mxu0 0
    %110 = vmatpush1.bf16.msra.mxu0 0
    %111 = vmatprep.subr.bf16.mxu0 0
    %112 = vmatpush1.bf16.msra.mxu0 0
    %113 = vmatprep.subr.bf16.mxu0 0
    %114 = vmatpush1.bf16.msra.mxu0 0
    %115 = vmatprep.subr.bf16.mxu0 0
    %116 = vmatpush1.bf16.msra.mxu0 0
    %117 = vmatprep.subr.bf16.mxu0 0
    %118 = vmatpush1.bf16.msra.mxu0 0
    %119 = vmatprep.subr.bf16.mxu0 0
    %120 = vmatpush1.bf16.msra.mxu0 0
    %121 = vmatprep.subr.bf16.mxu0 0
    %122 = vmatpush1.bf16.msra.mxu0 0
    %123 = vmatprep.subr.bf16.mxu0 0
    %124 = vmatpush1.bf16.msra.mxu0 0
    %125 = vmatprep.subr.bf16.mxu0 0
    %126 = vmatpush1.bf16.msra.mxu0 0
    %127 = vmatprep.subr.bf16.mxu0 0
    %128 = vmatpush1.bf16.msra.mxu0 0
    %129 = vmatprep.subr.bf16.mxu0 0
    %130 = vmatpush1.bf16.msra.mxu0 0
    %131 = vmatprep.subr.bf16.mxu0 0
    %132 = vmatpush1.bf16.msra.mxu0 0
    %133 = vmatprep.subr.bf16.mxu0 0
    %134 = vmatpush1.bf16.msra.mxu0 0
    %135 = vmatprep.subr.bf16.mxu0 0
    %136 = vmatpush1.bf16.msra.mxu0 0
    %137 = vmatprep.mubr.bf16.mxu0 0
    %138 = vmatmul.mubr.bf16.gmra.mrb[0].mxu0 %v103
    %v139 = vpop.f32.mrb[0].mxu0
    %v140 = vadd.f32 0.0, %v139
    %v141 = vpop.f32.mrb[0].mxu0
    %v142 = vadd.f32 0.0, %v141
    %v143 = vpop.f32.mrb[0].mxu0
    %v144 = vpop.f32.mrb[0].mxu0
    %145 = vdwg.mxu0
    %v146 = vpack.c.bf16 %v140, %v140
    %v147 = vpack.c.bf16 %v142, %v142
    %v148 = vld [vmem:[%s2] sm:$0x3]
    %v150 = vlaneseq
    %v151 = vshrl.u32 %v150, 7
    %v152 = vsub.s32 0, %v151
    %v153 = vrot.slane %v148, %v152
    %v154 = vlaneseq
    %v155 = vshrl.u32 %v154, 7
    %v156 = vsub.s32 1, %v155
    %v157 = vrot.slane %v148, %v156
    %v160 = vpack.c.bf16 %v153, %v153
    %v161 = vpack.c.bf16 %v157, %v157
    %v163 = vpack.i.b16 %v160, %v160
    %v165 = vlaneseq
    %v166 = vshrl.u32 %v165, 7
    %v167 = vsub.s32 0, %v166
    %v168 = vrot.slane %v163, %v167
    %v170 = vpack.i.b16 %v161, %v161
    %v172 = vlaneseq
    %v173 = vshrl.u32 %v172, 7
    %v174 = vsub.s32 0, %v173
    %v175 = vrot.slane %v170, %v174
    %v176 = vadd.bf16 %v146, %v168
    %v177 = vadd.bf16 %v147, %v175
    %v178 = vmax.bf16 %v176, 0
    %v179 = vmax.bf16 %v177, 0
    %v180 = vld [vmem:[#allocation7] sm:$0xff]
    %v181 = vld [vmem:[#allocation7 + $0x8] sm:$0xff]
    %v182 = vld [vmem:[#allocation7 + $0x10] sm:$0xff]
    %v183 = vld [vmem:[#allocation7 + $0x18] sm:$0xff]
    %v184 = vld [vmem:[#allocation7 + $0x20] sm:$0xff]
    %v185 = vld [vmem:[#allocation7 + $0x28] sm:$0xff]
    %v186 = vld [vmem:[#allocation7 + $0x30] sm:$0xff]
    %v187 = vld [vmem:[#allocation7 + $0x38] sm:$0xff]
    %v188 = vld [vmem:[#allocation7 + $0x40] sm:$0xff]
    %v189 = vld [vmem:[#allocation7 + $0x48] sm:$0xff]
    %v190 = vld [vmem:[#allocation7 + $0x50] sm:$0xff]
    %v191 = vld [vmem:[#allocation7 + $0x58] sm:$0xff]
    %v192 = vld [vmem:[#allocation7 + $0x60] sm:$0xff]
    %v193 = vld [vmem:[#allocation7 + $0x68] sm:$0xff]
    %v194 = vld [vmem:[#allocation7 + $0x70] sm:$0xff]
    %v195 = vld [vmem:[#allocation7 + $0x78] sm:$0xff]
    %v196 = vld [vmem:[#allocation7 + $0x80] sm:$0xff]
    %v197 = vld [vmem:[#allocation7 + $0x88] sm:$0xff]
    %v198 = vld [vmem:[#allocation7 + $0x90] sm:$0xff]
    %v199 = vld [vmem:[#allocation7 + $0x98] sm:$0xff]
    %v200 = vld [vmem:[#allocation7 + $0xa0] sm:$0xff]
    %v201 = vld [vmem:[#allocation7 + $0xa8] sm:$0xff]
    %v202 = vld [vmem:[#allocation7 + $0xb0] sm:$0xff]
    %v203 = vld [vmem:[#allocation7 + $0xb8] sm:$0xff]
    %v204 = vld [vmem:[#allocation7 + $0xc0] sm:$0xff]
    %v205 = vld [vmem:[#allocation7 + $0xc8] sm:$0xff]
    %v206 = vld [vmem:[#allocation7 + $0xd0] sm:$0xff]
    %v207 = vld [vmem:[#allocation7 + $0xd8] sm:$0xff]
    %v208 = vld [vmem:[#allocation7 + $0xe0] sm:$0xff]
    %v209 = vld [vmem:[#allocation7 + $0xe8] sm:$0xff]
    %v210 = vld [vmem:[#allocation7 + $0xf0] sm:$0xff]
    %v211 = vld [vmem:[#allocation7 + $0xf8] sm:$0xff]
    %v244 = vunpack.c.l.b16 %v180
    %v245 = vunpack.c.h.b16 %v180
    %v246 = vunpack.c.l.b16 %v181
    %v247 = vunpack.c.h.b16 %v181
    %v248 = vunpack.c.l.b16 %v182
    %v249 = vunpack.c.h.b16 %v182
    %v250 = vunpack.c.l.b16 %v183
    %v251 = vunpack.c.h.b16 %v183
    %v252 = vunpack.c.l.b16 %v184
    %v253 = vunpack.c.h.b16 %v184
    %v254 = vunpack.c.l.b16 %v185
    %v255 = vunpack.c.h.b16 %v185
    %v256 = vunpack.c.l.b16 %v186
    %v257 = vunpack.c.h.b16 %v186
    %v258 = vunpack.c.l.b16 %v187
    %v259 = vunpack.c.h.b16 %v187
    %v260 = vunpack.c.l.b16 %v188
    %v261 = vunpack.c.h.b16 %v188
    %v262 = vunpack.c.l.b16 %v189
    %v263 = vunpack.c.h.b16 %v189
    %v264 = vunpack.c.l.b16 %v190
    %v265 = vunpack.c.h.b16 %v190
    %v266 = vunpack.c.l.b16 %v191
    %v267 = vunpack.c.h.b16 %v191
    %v268 = vunpack.c.l.b16 %v192
    %v269 = vunpack.c.h.b16 %v192
    %v270 = vunpack.c.l.b16 %v193
    %v271 = vunpack.c.h.b16 %v193
    %v272 = vunpack.c.l.b16 %v194
    %v273 = vunpack.c.h.b16 %v194
    %v274 = vunpack.c.l.b16 %v195
    %v275 = vunpack.c.h.b16 %v195
    %v276 = vunpack.c.l.b16 %v196
    %v277 = vunpack.c.h.b16 %v196
    %v278 = vunpack.c.l.b16 %v197
    %v279 = vunpack.c.h.b16 %v197
    %v280 = vunpack.c.l.b16 %v198
    %v281 = vunpack.c.h.b16 %v198
    %v282 = vunpack.c.l.b16 %v199
    %v283 = vunpack.c.h.b16 %v199
    %v284 = vunpack.c.l.b16 %v200
    %v285 = vunpack.c.h.b16 %v200
    %v286 = vunpack.c.l.b16 %v201
    %v287 = vunpack.c.h.b16 %v201
    %v288 = vunpack.c.l.b16 %v202
    %v289 = vunpack.c.h.b16 %v202
    %v290 = vunpack.c.l.b16 %v203
    %v291 = vunpack.c.h.b16 %v203
    %v292 = vunpack.c.l.b16 %v204
    %v293 = vunpack.c.h.b16 %v204
    %v294 = vunpack.c.l.b16 %v205
    %v295 = vunpack.c.h.b16 %v205
    %v296 = vunpack.c.l.b16 %v206
    %v297 = vunpack.c.h.b16 %v206
    %v298 = vunpack.c.l.b16 %v207
    %v299 = vunpack.c.h.b16 %v207
    %v300 = vunpack.c.l.b16 %v208
    %v301 = vunpack.c.h.b16 %v208
    %v302 = vunpack.c.l.b16 %v209
    %v303 = vunpack.c.h.b16 %v209
    %v304 = vunpack.c.l.b16 %v210
    %v305 = vunpack.c.h.b16 %v210
    %v306 = vunpack.c.l.b16 %v211
    %v307 = vunpack.c.h.b16 %v211
    %v308 = vpack.c.b16 %v246, %v244
    %v309 = vpack.c.b16 %v247, %v245
    %v310 = vpack.c.b16 %v250, %v248
    %v311 = vpack.c.b16 %v251, %v249
    %v312 = vpack.c.b16 %v254, %v252
    %v313 = vpack.c.b16 %v255, %v253
    %v314 = vpack.c.b16 %v258, %v256
    %v315 = vpack.c.b16 %v259, %v257
    %v316 = vpack.c.b16 %v262, %v260
    %v317 = vpack.c.b16 %v263, %v261
    %v318 = vpack.c.b16 %v266, %v264
    %v319 = vpack.c.b16 %v267, %v265
    %v320 = vpack.c.b16 %v270, %v268
    %v321 = vpack.c.b16 %v271, %v269
    %v322 = vpack.c.b16 %v274, %v272
    %v323 = vpack.c.b16 %v275, %v273
    %v324 = vpack.c.b16 %v278, %v276
    %v325 = vpack.c.b16 %v279, %v277
    %v326 = vpack.c.b16 %v282, %v280
    %v327 = vpack.c.b16 %v283, %v281
    %v328 = vpack.c.b16 %v286, %v284
    %v329 = vpack.c.b16 %v287, %v285
    %v330 = vpack.c.b16 %v290, %v288
    %v331 = vpack.c.b16 %v291, %v289
    %v332 = vpack.c.b16 %v294, %v292
    %v333 = vpack.c.b16 %v295, %v293
    %v334 = vpack.c.b16 %v298, %v296
    %v335 = vpack.c.b16 %v299, %v297
    %v336 = vpack.c.b16 %v302, %v300
    %v337 = vpack.c.b16 %v303, %v301
    %v338 = vpack.c.b16 %v306, %v304
    %v339 = vpack.c.b16 %v307, %v305
    %372 = vmatprep.subr.bf16.mxu0 %v309
    %373 = vmatpush1.bf16.msra.mxu0 %v308
    %374 = vmatprep.subr.bf16.mxu0 %v311
    %375 = vmatpush1.bf16.msra.mxu0 %v310
    %376 = vmatprep.subr.bf16.mxu0 %v313
    %377 = vmatpush1.bf16.msra.mxu0 %v312
    %378 = vmatprep.subr.bf16.mxu0 %v315
    %379 = vmatpush1.bf16.msra.mxu0 %v314
    %380 = vmatprep.subr.bf16.mxu0 %v317
    %381 = vmatpush1.bf16.msra.mxu0 %v316
    %382 = vmatprep.subr.bf16.mxu0 %v319
    %383 = vmatpush1.bf16.msra.mxu0 %v318
    %384 = vmatprep.subr.bf16.mxu0 %v321
    %385 = vmatpush1.bf16.msra.mxu0 %v320
    %386 = vmatprep.subr.bf16.mxu0 %v323
    %387 = vmatpush1.bf16.msra.mxu0 %v322
    %388 = vmatprep.subr.bf16.mxu0 %v325
    %389 = vmatpush1.bf16.msra.mxu0 %v324
    %390 = vmatprep.subr.bf16.mxu0 %v327
    %391 = vmatpush1.bf16.msra.mxu0 %v326
    %392 = vmatprep.subr.bf16.mxu0 %v329
    %393 = vmatpush1.bf16.msra.mxu0 %v328
    %394 = vmatprep.subr.bf16.mxu0 %v331
    %395 = vmatpush1.bf16.msra.mxu0 %v330
    %396 = vmatprep.subr.bf16.mxu0 %v333
    %397 = vmatpush1.bf16.msra.mxu0 %v332
    %398 = vmatprep.subr.bf16.mxu0 %v335
    %399 = vmatpush1.bf16.msra.mxu0 %v334
    %400 = vmatprep.subr.bf16.mxu0 %v337
    %401 = vmatpush1.bf16.msra.mxu0 %v336
    %402 = vmatprep.subr.bf16.mxu0 %v339
    %403 = vmatpush1.bf16.msra.mxu0 %v338
    %404 = vmatprep.mubr.bf16.mxu0 %v179
    %405 = vmatmul.mubr.bf16.gmra.mrb[0].mxu0 %v178
    %v406 = vpop.f32.mrb[0].mxu0
    %v407 = vadd.f32 0.0, %v406
    %v408 = vpop.f32.mrb[0].mxu0
    %v409 = vadd.f32 0.0, %v408
    %v410 = vpop.f32.mrb[0].mxu0
    %v411 = vpop.f32.mrb[0].mxu0
    %412 = vdwg.mxu0
    %v413 = vpack.c.bf16 %v407, %v407
    %v414 = vpack.c.bf16 %v409, %v409
    %v415 = vld [vmem:[%s4] sm:$0x3]
    %v417 = vlaneseq
    %v418 = vshrl.u32 %v417, 7
    %v419 = vsub.s32 0, %v418
    %v420 = vrot.slane %v415, %v419
    %v421 = vlaneseq
    %v422 = vshrl.u32 %v421, 7
    %v423 = vsub.s32 1, %v422
    %v424 = vrot.slane %v415, %v423
    %v427 = vpack.c.bf16 %v420, %v420
    %v428 = vpack.c.bf16 %v424, %v424
    %v430 = vpack.i.b16 %v427, %v427
    %v432 = vlaneseq
    %v433 = vshrl.u32 %v432, 7
    %v434 = vsub.s32 0, %v433
    %v435 = vrot.slane %v430, %v434
    %v437 = vpack.i.b16 %v428, %v428
    %v439 = vlaneseq
    %v440 = vshrl.u32 %v439, 7
    %v441 = vsub.s32 0, %v440
    %v442 = vrot.slane %v437, %v441
    %v443 = vadd.bf16 %v413, %v435
    %v444 = vadd.bf16 %v414, %v442
    %v445 = vmax.bf16 %v443, 0
    %v446 = vmax.bf16 %v444, 0
    %v447 = vld [vmem:[#allocation8] sm:$0xf]
    %v448 = vld [vmem:[#allocation8 + $0x4] sm:$0xf]
    %v449 = vld [vmem:[#allocation8 + $0x8] sm:$0xf]
    %v450 = vld [vmem:[#allocation8 + $0xc] sm:$0xf]
    %v451 = vld [vmem:[#allocation8 + $0x10] sm:$0xf]
    %v452 = vld [vmem:[#allocation8 + $0x14] sm:$0xf]
    %v453 = vld [vmem:[#allocation8 + $0x18] sm:$0xf]
    %v454 = vld [vmem:[#allocation8 + $0x1c] sm:$0xf]
    %v455 = vld [vmem:[#allocation8 + $0x20] sm:$0xf]
    %v456 = vld [vmem:[#allocation8 + $0x24] sm:$0xf]
    %v457 = vld [vmem:[#allocation8 + $0x28] sm:$0xf]
    %v458 = vld [vmem:[#allocation8 + $0x2c] sm:$0xf]
    %v459 = vld [vmem:[#allocation8 + $0x30] sm:$0xf]
    %v460 = vld [vmem:[#allocation8 + $0x34] sm:$0xf]
    %v461 = vld [vmem:[#allocation8 + $0x38] sm:$0xf]
    %v462 = vld [vmem:[#allocation8 + $0x3c] sm:$0xf]
    %v463 = vld [vmem:[#allocation8 + $0x40] sm:$0xf]
    %v464 = vld [vmem:[#allocation8 + $0x44] sm:$0xf]
    %v465 = vld [vmem:[#allocation8 + $0x48] sm:$0xf]
    %v466 = vld [vmem:[#allocation8 + $0x4c] sm:$0xf]
    %v467 = vld [vmem:[#allocation8 + $0x50] sm:$0xf]
    %v468 = vld [vmem:[#allocation8 + $0x54] sm:$0xf]
    %v469 = vld [vmem:[#allocation8 + $0x58] sm:$0xf]
    %v470 = vld [vmem:[#allocation8 + $0x5c] sm:$0xf]
    %v471 = vld [vmem:[#allocation8 + $0x60] sm:$0xf]
    %v472 = vld [vmem:[#allocation8 + $0x64] sm:$0xf]
    %v473 = vld [vmem:[#allocation8 + $0x68] sm:$0xf]
    %v474 = vld [vmem:[#allocation8 + $0x6c] sm:$0xf]
    %v475 = vld [vmem:[#allocation8 + $0x70] sm:$0xf]
    %v476 = vld [vmem:[#allocation8 + $0x74] sm:$0xf]
    %v477 = vld [vmem:[#allocation8 + $0x78] sm:$0xf]
    %v478 = vld [vmem:[#allocation8 + $0x7c] sm:$0xf]
    %v479 = vld [vmem:[%s6] sm:$0x1]
    %v481 = vlaneseq
    %v482 = vshrl.u32 %v481, 7
    %v483 = vsub.s32 0, %v482
    %v484 = vrot.slane %v479, %v483
    %v518 = vunpack.c.l.b16 %v447
    %v519 = vunpack.c.l.b16 %v448
    %v520 = vunpack.c.l.b16 %v449
    %v521 = vunpack.c.l.b16 %v450
    %v522 = vunpack.c.l.b16 %v451
    %v523 = vunpack.c.l.b16 %v452
    %v524 = vunpack.c.l.b16 %v453
    %v525 = vunpack.c.l.b16 %v454
    %v526 = vunpack.c.l.b16 %v455
    %v527 = vunpack.c.l.b16 %v456
    %v528 = vunpack.c.l.b16 %v457
    %v529 = vunpack.c.l.b16 %v458
    %v530 = vunpack.c.l.b16 %v459
    %v531 = vunpack.c.l.b16 %v460
    %v532 = vunpack.c.l.b16 %v461
    %v533 = vunpack.c.l.b16 %v462
    %v534 = vunpack.c.l.b16 %v463
    %v535 = vunpack.c.l.b16 %v464
    %v536 = vunpack.c.l.b16 %v465
    %v537 = vunpack.c.l.b16 %v466
    %v538 = vunpack.c.l.b16 %v467
    %v539 = vunpack.c.l.b16 %v468
    %v540 = vunpack.c.l.b16 %v469
    %v541 = vunpack.c.l.b16 %v470
    %v542 = vunpack.c.l.b16 %v471
    %v543 = vunpack.c.l.b16 %v472
    %v544 = vunpack.c.l.b16 %v473
    %v545 = vunpack.c.l.b16 %v474
    %v546 = vunpack.c.l.b16 %v475
    %v547 = vunpack.c.l.b16 %v476
    %v548 = vunpack.c.l.b16 %v477
    %v549 = vunpack.c.l.b16 %v478
    %v550 = vpack.c.b16 %v519, %v518
    %v551 = vpack.c.b16 %v521, %v520
    %v552 = vpack.c.b16 %v523, %v522
    %v553 = vpack.c.b16 %v525, %v524
    %v554 = vpack.c.b16 %v527, %v526
    %v555 = vpack.c.b16 %v529, %v528
    %v556 = vpack.c.b16 %v531, %v530
    %v557 = vpack.c.b16 %v533, %v532
    %v558 = vpack.c.b16 %v535, %v534
    %v559 = vpack.c.b16 %v537, %v536
    %v560 = vpack.c.b16 %v539, %v538
    %v561 = vpack.c.b16 %v541, %v540
    %v562 = vpack.c.b16 %v543, %v542
    %v563 = vpack.c.b16 %v545, %v544
    %v564 = vpack.c.b16 %v547, %v546
    %v565 = vpack.c.b16 %v549, %v548
    %582 = vmatprep.subr.bf16.mxu0 0
    %583 = vmatpush1.bf16.msra.mxu0 %v550
    %584 = vmatprep.subr.bf16.mxu0 0
    %585 = vmatpush1.bf16.msra.mxu0 %v551
    %586 = vmatprep.subr.bf16.mxu0 0
    %587 = vmatpush1.bf16.msra.mxu0 %v552
    %588 = vmatprep.subr.bf16.mxu0 0
    %589 = vmatpush1.bf16.msra.mxu0 %v553
    %590 = vmatprep.subr.bf16.mxu0 0
    %591 = vmatpush1.bf16.msra.mxu0 %v554
    %592 = vmatprep.subr.bf16.mxu0 0
    %593 = vmatpush1.bf16.msra.mxu0 %v555
    %594 = vmatprep.subr.bf16.mxu0 0
    %595 = vmatpush1.bf16.msra.mxu0 %v556
    %596 = vmatprep.subr.bf16.mxu0 0
    %597 = vmatpush1.bf16.msra.mxu0 %v557
    %598 = vmatprep.subr.bf16.mxu0 0
    %599 = vmatpush1.bf16.msra.mxu0 %v558
    %600 = vmatprep.subr.bf16.mxu0 0
    %601 = vmatpush1.bf16.msra.mxu0 %v559
    %602 = vmatprep.subr.bf16.mxu0 0
    %603 = vmatpush1.bf16.msra.mxu0 %v560
    %604 = vmatprep.subr.bf16.mxu0 0
    %605 = vmatpush1.bf16.msra.mxu0 %v561
    %606 = vmatprep.subr.bf16.mxu0 0
    %607 = vmatpush1.bf16.msra.mxu0 %v562
    %608 = vmatprep.subr.bf16.mxu0 0
    %609 = vmatpush1.bf16.msra.mxu0 %v563
    %610 = vmatprep.subr.bf16.mxu0 0
    %611 = vmatpush1.bf16.msra.mxu0 %v564
    %612 = vmatprep.subr.bf16.mxu0 0
    %613 = vmatpush1.bf16.msra.mxu0 %v565
    %614 = vmatprep.mubr.bf16.mxu0 %v446
    %615 = vmatmul.mubr.bf16.gmra.mrb[0].mxu0 %v445
    %v616 = vpop.f32.mrb[0].mxu0
    %v617 = vadd.f32 %v484, %v616
    %v618 = vpop.f32.mrb[0].mxu0
    %v619 = vpop.f32.mrb[0].mxu0
    %v620 = vpop.f32.mrb[0].mxu0
    %621 = vdwg.mxu0
    %v622 = vtanh.pop %v617
    %v623 = vld [vmem:[%s7] sm:$0x1]
    %v625 = vlaneseq
    %v626 = vshrl.u32 %v625, 7
    %v627 = vsub.s32 0, %v626
    %v628 = vrot.slane %v623, %v627
    %v630 = vmul.f32 %v622, %v628
    %v631 = vld [vmem:[%s8] sm:$0x1]
    %v633 = vlaneseq
    %v634 = vshrl.u32 %v633, 7
    %v635 = vsub.s32 0, %v634
    %v636 = vrot.slane %v631, %v635
    %v638 = vadd.f32 %v630, %v636
    %v639 = vpack.c.bf16 %v638, %v638
    %640 = vst [vmem:[#allocation10] sm:$0xf] %v639
    // Predicated region
    $region54: #{_actor_forward_padded.1} parent=1 // pred_check
      _
    $region55: #{_actor_forward_padded.1} parent=1 // pred_check_branch
      %642 = sbr.rel (0) target = $region57
    $region56: #{_actor_forward_padded.1} parent=1 // pred_region
      %s644 = ssub.s32 64, 64
      %645 = vsyncadd [#allocation4], %s644
      %s647 = sshll.u32 [#allocation10], 4
      %s648 = int_to_ptr.vmem [resolvable:$true] %s647
      %650 = dma.vmem_to_hbm [thread:$0]  %s648, 64, %s9, [#allocation4]
    $region57: #{_actor_forward_padded.1} parent=1 // pred_fallthru
      _
    // Predicated region
    $region58: #{_actor_forward_padded.1} parent=1 // pred_check
      _
    $region59: #{_actor_forward_padded.1} parent=1 // pred_check_branch
      %652 = sbr.rel (0) target = $region61
    $region60: #{_actor_forward_padded.1} parent=1 // pred_region
      %653 = dma.done [#allocation4], 64
    $region61: #{_actor_forward_padded.1} parent=1 // pred_fallthru
      _
    %654 = vsyncpa [#allocation3], 1
    %655 = vsyncpa [#allocation6], 1
    %656 = vsyncpa [#allocation9], 1
    %657 = vsyncpa [#allocation4], 1

</llo_original>
